<compile_context>
chip_gen: v7x
topology: tpu7x:2x2x1
jax: 0.10.0
libtpu: 0.0.40
codegen_flags: <defaults>
</compile_context>

<pallas_src>
import jax
import jax.numpy as jnp
from jax.experimental import pallas as pl
from jax.experimental.pallas import tpu as pltpu


def _round_up(n, m):
    return ((n + m - 1) // m) * m


def _net4_kernel(x_ref, w1_ref, b1_ref, w2_ref, b2_ref, w3t_ref, b3_ref, o_ref):
    # fc1 + ReLU (dropout is identity at inference); bf16 MXU, f32 accumulate.
    x = x_ref[...].astype(jnp.bfloat16)                                # (TM, 310)
    h1 = jnp.dot(x, w1_ref[...], preferred_element_type=jnp.float32)  # (TM, 150)
    h1 = jnp.maximum(h1 + b1_ref[...], 0.0)
    # fc2 + ReLU
    h2 = jnp.dot(h1.astype(jnp.bfloat16), w2_ref[...],
                 preferred_element_type=jnp.float32)                   # (TM, 60)
    h2 = jnp.maximum(h2 + b2_ref[...], 0.0)
    # fc3: (1, 60) @ (60, TM) -> lane-dense (1, TM) result (batch on lanes).
    h3t = jnp.dot(w3t_ref[...], h2.T, preferred_element_type=jnp.float32)
    o_ref[...] = (h3t + b3_ref[...]).astype(o_ref.dtype)


def net4_forward(x, params, *, tm=512):
    """x: (B, 310) float.  Returns (B, 1) float32."""
    w1, b1 = params["w1"], params["b1"]     # (310, 150) bf16, (1, 150) f32
    w2, b2 = params["w2"], params["b2"]     # (150, 60)  bf16, (1, 60)  f32
    w3t, b3 = params["w3t"], params["b3"]   # (1, 60)    f32,  (1, 1)   f32

    B, F = x.shape
    assert F == 310, F

    # Effective batch tile: multiple of 8; multiple of 128 when the grid has
    # more than one step (lane-dense output-block constraint).
    tm_eff = tm if B > tm else _round_up(B, 8)
    b_pad = _round_up(B, tm_eff)
    if b_pad != B:
        x = jnp.pad(x, ((0, b_pad - B), (0, 0)))

    resident = lambda arr: pl.BlockSpec(arr.shape, lambda i: (0, 0))

    out = pl.pallas_call(
        _net4_kernel,
        out_shape=jax.ShapeDtypeStruct((1, b_pad), jnp.float32),
        grid=(b_pad // tm_eff,),
        in_specs=[
            pl.BlockSpec((tm_eff, F), lambda i: (i, 0)),   # x: streamed by tile
            resident(w1), resident(b1),
            resident(w2), resident(b2),
            resident(w3t), resident(b3),
        ],
        out_specs=pl.BlockSpec((1, tm_eff), lambda i: (0, i)),  # lane-dense
        compiler_params=pltpu.CompilerParams(
            dimension_semantics=("parallel",),
            vmem_limit_bytes=32 * 1024 * 1024,
        ),
    )(x, w1, b1, w2, b2, w3t, b3)

    # Layout plumbing back to the PyTorch (B, 1) convention.
    return out.reshape(b_pad, 1)[:B]


def init_params(key):
    """PyTorch nn.Linear default init (U[-1/sqrt(fan_in), +1/sqrt(fan_in)]).

    Weights are stored transposed relative to PyTorch, i.e. (in, out), and
    pre-cast to bf16 for the MXU; biases stay f32 as (1, out) rows.  fc3 is
    stored as a (1, 60) row so the kernel can emit a lane-dense result.
    """
    def linear(key, fan_in, fan_out, w_dtype):
        kw, kb = jax.random.split(key)
        bound = 1.0 / (fan_in ** 0.5)
        w = jax.random.uniform(kw, (fan_in, fan_out), jnp.float32, -bound, bound)
        b = jax.random.uniform(kb, (1, fan_out), jnp.float32, -bound, bound)
        return w.astype(w_dtype), b

    k1, k2, k3 = jax.random.split(key, 3)
    w1, b1 = linear(k1, 310, 150, jnp.bfloat16)
    w2, b2 = linear(k2, 150, 60, jnp.bfloat16)
    w3, b3 = linear(k3, 60, 1, jnp.float32)
    return {"w1": w1, "b1": b1, "w2": w2, "b2": b2,
            "w3t": w3.T, "b3": b3}


def net4_reference(x, params):
    """Pure-JAX reference using the same bf16 operands / f32 accumulation."""
    h = jnp.dot(x.astype(jnp.bfloat16), params["w1"],
                preferred_element_type=jnp.float32) + params["b1"]
    h = jnp.maximum(h, 0.0)
    h = jnp.dot(h.astype(jnp.bfloat16), params["w2"],
                preferred_element_type=jnp.float32) + params["b2"]
    h = jnp.maximum(h, 0.0)
    return jnp.dot(h, params["w3t"].T,
                   preferred_element_type=jnp.float32) + params["b3"]


if __name__ == "__main__":
    key = jax.random.PRNGKey(0)
    kx, kp = jax.random.split(key)

    # Small test: B=250 with tm=128 exercises a 2-step batch grid, padding to
    # 256 rows, resident weights, and the lane-dense (1, TM) output path.
    B = 250
    x = jax.random.normal(kx, (B, 310), jnp.float32)
    params = init_params(kp)

    out = net4_forward(x, params, tm=128)
    out = jax.block_until_ready(out)

    ref = net4_reference(x, params)
    assert out.shape == (B, 1), out.shape
    max_err = float(jnp.max(jnp.abs(out - ref)))
    assert jnp.allclose(out, ref, atol=2e-3, rtol=2e-3), max_err

    print("KERNEL_OK")
</pallas_src>

<mosaic_0001>
module attributes {stable_mosaic.version = 11 : i64} {
  func.func @_net4_kernel(%arg0: i32, %arg1: memref<128x310xf32, #tpu.memory_space<vmem>>, %arg2: memref<310x150xbf16, #tpu.memory_space<vmem>>, %arg3: memref<1x150xf32, #tpu.memory_space<vmem>>, %arg4: memref<150x60xbf16, #tpu.memory_space<vmem>>, %arg5: memref<1x60xf32, #tpu.memory_space<vmem>>, %arg6: memref<1x60xf32, #tpu.memory_space<vmem>>, %arg7: memref<1x1xf32, #tpu.memory_space<vmem>>, %arg8: memref<1x128xf32, #tpu.memory_space<vmem>>) attributes {dimension_semantics = [#tpu.dimension_semantics<parallel>], iteration_bounds = array<i64: 2>, scalar_prefetch = 0 : i64, scratch_operands = 0 : i64, tpu.core_type = #tpu.core_type<tc>, window_params = [{transform_indices = @transform_0, window_bounds = array<i64: 128, 310>}, {pipeline_mode = #tpu.pipeline_mode<synchronous>, transform_indices = @transform_1, window_bounds = array<i64: 310, 150>}, {pipeline_mode = #tpu.pipeline_mode<synchronous>, transform_indices = @transform_2, window_bounds = array<i64: 1, 150>}, {pipeline_mode = #tpu.pipeline_mode<synchronous>, transform_indices = @transform_3, window_bounds = array<i64: 150, 60>}, {pipeline_mode = #tpu.pipeline_mode<synchronous>, transform_indices = @transform_4, window_bounds = array<i64: 1, 60>}, {pipeline_mode = #tpu.pipeline_mode<synchronous>, transform_indices = @transform_5, window_bounds = array<i64: 1, 60>}, {pipeline_mode = #tpu.pipeline_mode<synchronous>, transform_indices = @transform_6, window_bounds = array<i64: 1, 1>}, {transform_indices = @transform_7, window_bounds = array<i64: 1, 128>}]} {
    %c0 = arith.constant 0 : index
    %c0_0 = arith.constant 0 : index
    %0 = vector.load %arg1[%c0, %c0_0] : memref<128x310xf32, #tpu.memory_space<vmem>>, vector<128x310xf32>
    %1 = arith.truncf %0 : vector<128x310xf32> to vector<128x310xbf16>
    %c0_1 = arith.constant 0 : index
    %c0_2 = arith.constant 0 : index
    %2 = vector.load %arg2[%c0_1, %c0_2] : memref<310x150xbf16, #tpu.memory_space<vmem>>, vector<310x150xbf16>
    %cst = arith.constant dense<0.000000e+00> : vector<128x150xf32>
    %3 = tpu.matmul %1, %2, %cst {dimension_numbers = #tpu.dot_dimension_numbers<[1], [0], [0], [1], [0, 0, 1, 1], [], []>} : vector<128x310xbf16>, vector<310x150xbf16>, vector<128x150xf32> -> vector<128x150xf32>
    %c0_3 = arith.constant 0 : index
    %c0_4 = arith.constant 0 : index
    %4 = vector.load %arg3[%c0_3, %c0_4] : memref<1x150xf32, #tpu.memory_space<vmem>>, vector<1x150xf32>
    %5 = vector.broadcast %4 : vector<1x150xf32> to vector<128x150xf32>
    %6 = arith.addf %3, %5 : vector<128x150xf32>
    %cst_5 = arith.constant 0.000000e+00 : f32
    %7 = vector.broadcast %cst_5 : f32 to vector<128x150xf32>
    %8 = arith.maximumf %6, %7 : vector<128x150xf32>
    %9 = arith.truncf %8 : vector<128x150xf32> to vector<128x150xbf16>
    %c0_6 = arith.constant 0 : index
    %c0_7 = arith.constant 0 : index
    %10 = vector.load %arg4[%c0_6, %c0_7] : memref<150x60xbf16, #tpu.memory_space<vmem>>, vector<150x60xbf16>
    %cst_8 = arith.constant dense<0.000000e+00> : vector<128x60xf32>
    %11 = tpu.matmul %9, %10, %cst_8 {dimension_numbers = #tpu.dot_dimension_numbers<[1], [0], [0], [1], [0, 0, 1, 1], [], []>} : vector<128x150xbf16>, vector<150x60xbf16>, vector<128x60xf32> -> vector<128x60xf32>
    %c0_9 = arith.constant 0 : index
    %c0_10 = arith.constant 0 : index
    %12 = vector.load %arg5[%c0_9, %c0_10] : memref<1x60xf32, #tpu.memory_space<vmem>>, vector<1x60xf32>
    %13 = vector.broadcast %12 : vector<1x60xf32> to vector<128x60xf32>
    %14 = arith.addf %11, %13 : vector<128x60xf32>
    %cst_11 = arith.constant 0.000000e+00 : f32
    %15 = vector.broadcast %cst_11 : f32 to vector<128x60xf32>
    %16 = arith.maximumf %14, %15 : vector<128x60xf32>
    %c0_12 = arith.constant 0 : index
    %c0_13 = arith.constant 0 : index
    %17 = vector.load %arg6[%c0_12, %c0_13] : memref<1x60xf32, #tpu.memory_space<vmem>>, vector<1x60xf32>
    %18 = tpu.transpose %16, [1, 0] : vector<128x60xf32> -> vector<60x128xf32>
    %cst_14 = arith.constant dense<0.000000e+00> : vector<1x128xf32>
    %19 = tpu.matmul %17, %18, %cst_14 {dimension_numbers = #tpu.dot_dimension_numbers<[1], [0], [0], [1], [0, 0, 1, 1], [], []>} : vector<1x60xf32>, vector<60x128xf32>, vector<1x128xf32> -> vector<1x128xf32>
    %c0_15 = arith.constant 0 : index
    %c0_16 = arith.constant 0 : index
    %20 = vector.load %arg7[%c0_15, %c0_16] : memref<1x1xf32, #tpu.memory_space<vmem>>, vector<1x1xf32>
    %21 = vector.broadcast %20 : vector<1x1xf32> to vector<1x128xf32>
    %22 = arith.addf %19, %21 : vector<1x128xf32>
    %c0_17 = arith.constant 0 : index
    %c0_18 = arith.constant 0 : index
    %23 = vector.load %arg8[%c0_17, %c0_18] : memref<1x128xf32, #tpu.memory_space<vmem>>, vector<1x128xf32>
    tpu.vector_store %arg8[%c0_17, %c0_18], %22 {strides = array<i32>} : memref<1x128xf32, #tpu.memory_space<vmem>>, vector<1x128xf32>,
    return
  }
  func.func @transform_0(%arg0: i32) -> (i32, i32) {
    %c0_i32 = arith.constant 0 : i32
    %c0_i32_0 = arith.constant 0 : i32
    return %arg0, %c0_i32 : i32, i32
  }
  func.func @transform_1(%arg0: i32) -> (i32, i32) {
    %c0_i32 = arith.constant 0 : i32
    %c0_i32_0 = arith.constant 0 : i32
    %c0_i32_1 = arith.constant 0 : i32
    return %c0_i32, %c0_i32_0 : i32, i32
  }
  func.func @transform_2(%arg0: i32) -> (i32, i32) {
    %c0_i32 = arith.constant 0 : i32
    %c0_i32_0 = arith.constant 0 : i32
    %c0_i32_1 = arith.constant 0 : i32
    return %c0_i32, %c0_i32_0 : i32, i32
  }
  func.func @transform_3(%arg0: i32) -> (i32, i32) {
    %c0_i32 = arith.constant 0 : i32
    %c0_i32_0 = arith.constant 0 : i32
    %c0_i32_1 = arith.constant 0 : i32
    return %c0_i32, %c0_i32_0 : i32, i32
  }
  func.func @transform_4(%arg0: i32) -> (i32, i32) {
    %c0_i32 = arith.constant 0 : i32
    %c0_i32_0 = arith.constant 0 : i32
    %c0_i32_1 = arith.constant 0 : i32
    return %c0_i32, %c0_i32_0 : i32, i32
  }
  func.func @transform_5(%arg0: i32) -> (i32, i32) {
    %c0_i32 = arith.constant 0 : i32
    %c0_i32_0 = arith.constant 0 : i32
    %c0_i32_1 = arith.constant 0 : i32
    return %c0_i32, %c0_i32_0 : i32, i32
  }
  func.func @transform_6(%arg0: i32) -> (i32, i32) {
    %c0_i32 = arith.constant 0 : i32
    %c0_i32_0 = arith.constant 0 : i32
    %c0_i32_1 = arith.constant 0 : i32
    return %c0_i32, %c0_i32_0 : i32, i32
  }
  func.func @transform_7(%arg0: i32) -> (i32, i32) {
    %c0_i32 = arith.constant 0 : i32
    %c0_i32_0 = arith.constant 0 : i32
    return %c0_i32, %arg0 : i32, i32
  }
}

</mosaic_0001>

<llo_original>
// kernel: tpu_custom_call.1
$region0: #{tpu_custom_call.1}
  #allocation0 [shape = 'u32[]', space=smem, size = 0x4, offset = 0x4, fixed_abs, tag = 'smem constant byte address 0x4 - core index']
  #allocation1 [shape = 'u32[144,128]{1,0:T(1,128)}', space=vmem, size = 0x12000, scoped, tag = 'internal scratch']
  #allocation2 [shape = 'f32[1,1]{1,0:T(1,128)S(1)}', space=vmem, size = 0x200, scoped, tag = 'scoped memory for tpu_custom_call.1']
  %s0 = inlined_call_operand.vmem [shape: f32[256,310], index: 0, kind: input, shape index: {}]
  %s1 = inlined_call_operand.vmem [shape: bf16[310,150], index: 1, kind: input, shape index: {}]
  %s2 = inlined_call_operand.vmem [shape: f32[1,150], index: 2, kind: input, shape index: {}]
  %s3 = inlined_call_operand.vmem [shape: bf16[150,60], index: 3, kind: input, shape index: {}]
  %s4 = inlined_call_operand.vmem [shape: f32[1,60], index: 4, kind: input, shape index: {}]
  %s5 = inlined_call_operand.vmem [shape: f32[1,60], index: 5, kind: input, shape index: {}]
  %s6 = inlined_call_operand.<no memory space> [shape: f32[1,1], index: 6, kind: input, shape index: {}]
  %s7 = inlined_call_operand.hbm [shape: f32[1,256], index: 7, kind: output, shape index: {}]
  %s8 = sld [smem:[#allocation0]]
  $region61: #{tpu_custom_call.1} parent=0
    _
  %s10 = ssub.s32 1, %s8
  %s11 = scalar_select 0, %s10, %s8
  %v12 = vstv %s6
  %13 = vst [vmem:[#allocation2] sm:$0x1] %v12
  $region1: #{tpu_custom_call.1} parent=0
    #allocation3 [shape = 'u8[1024]{0}', space=vmem, size = 0x400, scoped, tag = 'output window, operand 0']
    #allocation4 [shape = 's32[2]{0}', space=sflag, size = 0x8, scoped, tag = 'scoped memory for tpu_custom_call.1']
    %14 = vsyncpa [#allocation4], 0
    %s15 = scalar_lea.sflag [#allocation4], 1
    %16 = vsyncpa %s15, 0
    loop: start=0, step=1, limit=4
    $region2: #{tpu_custom_call.1} parent=1 // loop_pre_header
      _
    $region3: #{tpu_custom_call.1} parent=1 // loop_header
      %s18 = sphi 0, %s22
      %p19 = scmp.ge.s32.totalorder %s18, 4
      %s28 = sphi 0, %s30
      %s31 = sphi 0, %s28
      %s32 = sphi 0, %s31
      %s48 = sphi 0, %s32
      %s52 = sphi 0, %s52
      %s54 = sphi 0, %s52
      %s55 = sphi 0, %s54
      %s69 = sphi 0, %s55
      %s73 = sphi 0, %s73
      %s75 = sphi 0, %s73
      %s76 = sphi 0, %s75
      %s90 = sphi 0, %s76
      %s94 = sphi 0, %s94
      %s96 = sphi 0, %s94
      %s97 = sphi 0, %s96
      %s111 = sphi 0, %s97
      %s115 = sphi 0, %s115
      %s117 = sphi 0, %s115
      %s118 = sphi 0, %s117
      %s132 = sphi 0, %s118
      %s136 = sphi 0, %s136
      %s138 = sphi 0, %s136
      %s139 = sphi 0, %s138
      %s153 = sphi 0, %s139
      %s157 = sphi 0, %s157
      %s159 = sphi 0, %s157
      %s160 = sphi 0, %s159
      %s174 = sphi 0, %s160
      %s180 = sphi 0, %s182
      %s183 = sphi 0, %s180
      %s184 = sphi 0, %s183
      %s200 = sphi 0, %s184
    $region4: #{tpu_custom_call.1} parent=1 // loop_header_branch
      %21 = sbr.rel (%p19) target = $region8
    $region5: #{tpu_custom_call.1} parent=1 // loop_body
      %s23 = ssub.s32 %s18, 1
      %s24 = ssub.s32 %s18, 2
      %s25 = sadd.s32 %s18, 1
      %s26 = ssub.s32 %s18, %s25
      %p27 = scmp.eq.s32.totalorder %s26, 0
      %s29 = sadd.s32 %s28, 1
      %s30 = scalar_select %p27, %s28, %s29
      %p33 = pneg %p27
      %p34 = scmp.eq.s32.totalorder %s18, 1
      %p35 = por %p33, %p34
      %p36 = scmp.ne.s32.totalorder %s28, %s31
      %p37 = scmp.eq.s32.totalorder %s18, 0
      %p38 = por %p36, %p37
      %p39 = scmp.ne.s32.totalorder %s28, %s31
      %p40 = scmp.eq.s32.totalorder %s23, 1
      %p41 = por %p39, %p40
      %p42 = scmp.ne.s32.totalorder %s31, %s32
      %p43 = scmp.eq.s32.totalorder %s23, 0
      %p44 = por %p42, %p43
      %p45 = scmp.ne.s32.totalorder %s31, %s32
      %p46 = scmp.eq.s32.totalorder %s24, 1
      %p47 = por %p45, %p46
      %p49 = scmp.ne.s32.totalorder %s32, %s48
      %p50 = scmp.eq.s32.totalorder %s24, 0
      %p51 = por %p49, %p50
      %s53 = sadd.s32 %s52, 1
      %p56 = scmp.eq.s32.totalorder %s18, 1
      %p57 = scmp.ne.s32.totalorder %s52, %s54
      %p58 = scmp.eq.s32.totalorder %s18, 0
      %p59 = por %p57, %p58
      %p60 = scmp.ne.s32.totalorder %s52, %s54
      %p61 = scmp.eq.s32.totalorder %s23, 1
      %p62 = por %p60, %p61
      %p63 = scmp.ne.s32.totalorder %s54, %s55
      %p64 = scmp.eq.s32.totalorder %s23, 0
      %p65 = por %p63, %p64
      %p66 = scmp.ne.s32.totalorder %s54, %s55
      %p67 = scmp.eq.s32.totalorder %s24, 1
      %p68 = por %p66, %p67
      %p70 = scmp.ne.s32.totalorder %s55, %s69
      %p71 = scmp.eq.s32.totalorder %s24, 0
      %p72 = por %p70, %p71
      %s74 = sadd.s32 %s73, 1
      %p77 = scmp.eq.s32.totalorder %s18, 1
      %p78 = scmp.ne.s32.totalorder %s73, %s75
      %p79 = scmp.eq.s32.totalorder %s18, 0
      %p80 = por %p78, %p79
      %p81 = scmp.ne.s32.totalorder %s73, %s75
      %p82 = scmp.eq.s32.totalorder %s23, 1
      %p83 = por %p81, %p82
      %p84 = scmp.ne.s32.totalorder %s75, %s76
      %p85 = scmp.eq.s32.totalorder %s23, 0
      %p86 = por %p84, %p85
      %p87 = scmp.ne.s32.totalorder %s75, %s76
      %p88 = scmp.eq.s32.totalorder %s24, 1
      %p89 = por %p87, %p88
      %p91 = scmp.ne.s32.totalorder %s76, %s90
      %p92 = scmp.eq.s32.totalorder %s24, 0
      %p93 = por %p91, %p92
      %s95 = sadd.s32 %s94, 1
      %p98 = scmp.eq.s32.totalorder %s18, 1
      %p99 = scmp.ne.s32.totalorder %s94, %s96
      %p100 = scmp.eq.s32.totalorder %s18, 0
      %p101 = por %p99, %p100
      %p102 = scmp.ne.s32.totalorder %s94, %s96
      %p103 = scmp.eq.s32.totalorder %s23, 1
      %p104 = por %p102, %p103
      %p105 = scmp.ne.s32.totalorder %s96, %s97
      %p106 = scmp.eq.s32.totalorder %s23, 0
      %p107 = por %p105, %p106
      %p108 = scmp.ne.s32.totalorder %s96, %s97
      %p109 = scmp.eq.s32.totalorder %s24, 1
      %p110 = por %p108, %p109
      %p112 = scmp.ne.s32.totalorder %s97, %s111
      %p113 = scmp.eq.s32.totalorder %s24, 0
      %p114 = por %p112, %p113
      %s116 = sadd.s32 %s115, 1
      %p119 = scmp.eq.s32.totalorder %s18, 1
      %p120 = scmp.ne.s32.totalorder %s115, %s117
      %p121 = scmp.eq.s32.totalorder %s18, 0
      %p122 = por %p120, %p121
      %p123 = scmp.ne.s32.totalorder %s115, %s117
      %p124 = scmp.eq.s32.totalorder %s23, 1
      %p125 = por %p123, %p124
      %p126 = scmp.ne.s32.totalorder %s117, %s118
      %p127 = scmp.eq.s32.totalorder %s23, 0
      %p128 = por %p126, %p127
      %p129 = scmp.ne.s32.totalorder %s117, %s118
      %p130 = scmp.eq.s32.totalorder %s24, 1
      %p131 = por %p129, %p130
      %p133 = scmp.ne.s32.totalorder %s118, %s132
      %p134 = scmp.eq.s32.totalorder %s24, 0
      %p135 = por %p133, %p134
      %s137 = sadd.s32 %s136, 1
      %p140 = scmp.eq.s32.totalorder %s18, 1
      %p141 = scmp.ne.s32.totalorder %s136, %s138
      %p142 = scmp.eq.s32.totalorder %s18, 0
      %p143 = por %p141, %p142
      %p144 = scmp.ne.s32.totalorder %s136, %s138
      %p145 = scmp.eq.s32.totalorder %s23, 1
      %p146 = por %p144, %p145
      %p147 = scmp.ne.s32.totalorder %s138, %s139
      %p148 = scmp.eq.s32.totalorder %s23, 0
      %p149 = por %p147, %p148
      %p150 = scmp.ne.s32.totalorder %s138, %s139
      %p151 = scmp.eq.s32.totalorder %s24, 1
      %p152 = por %p150, %p151
      %p154 = scmp.ne.s32.totalorder %s139, %s153
      %p155 = scmp.eq.s32.totalorder %s24, 0
      %p156 = por %p154, %p155
      %s158 = sadd.s32 %s157, 1
      %p161 = scmp.eq.s32.totalorder %s18, 1
      %p162 = scmp.ne.s32.totalorder %s157, %s159
      %p163 = scmp.eq.s32.totalorder %s18, 0
      %p164 = por %p162, %p163
      %p165 = scmp.ne.s32.totalorder %s157, %s159
      %p166 = scmp.eq.s32.totalorder %s23, 1
      %p167 = por %p165, %p166
      %p168 = scmp.ne.s32.totalorder %s159, %s160
      %p169 = scmp.eq.s32.totalorder %s23, 0
      %p170 = por %p168, %p169
      %p171 = scmp.ne.s32.totalorder %s159, %s160
      %p172 = scmp.eq.s32.totalorder %s24, 1
      %p173 = por %p171, %p172
      %p175 = scmp.ne.s32.totalorder %s160, %s174
      %p176 = scmp.eq.s32.totalorder %s24, 0
      %p177 = por %p175, %p176
      %s178 = ssub.s32 %s18, %s25
      %p179 = scmp.eq.s32.totalorder %s178, 0
      %s181 = sadd.s32 %s180, 1
      %s182 = scalar_select %p179, %s180, %s181
      %p185 = pneg %p179
      %p186 = scmp.eq.s32.totalorder %s18, 1
      %p187 = por %p185, %p186
      %p188 = scmp.ne.s32.totalorder %s180, %s183
      %p189 = scmp.eq.s32.totalorder %s18, 0
      %p190 = por %p188, %p189
      %p191 = scmp.ne.s32.totalorder %s180, %s183
      %p192 = scmp.eq.s32.totalorder %s23, 1
      %p193 = por %p191, %p192
      %p194 = scmp.ne.s32.totalorder %s183, %s184
      %p195 = scmp.eq.s32.totalorder %s23, 0
      %p196 = por %p194, %p195
      %p197 = scmp.ne.s32.totalorder %s183, %s184
      %p198 = scmp.eq.s32.totalorder %s24, 1
      %p199 = por %p197, %p198
      %p201 = scmp.ne.s32.totalorder %s184, %s200
      %p202 = scmp.eq.s32.totalorder %s24, 0
      %p203 = por %p201, %p202
      %p204 = scmp.le.s32.totalorder 1, %s18
      %p205 = scmp.lt.s32.totalorder %s18, 3
      %p206 = pnand %p204, %p205
      %p207 = pneg %p206
      // Predicated region
      $region9: #{tpu_custom_call.1} parent=5 // pred_check
        _
      $region10: #{tpu_custom_call.1} parent=5 // pred_check_branch
        %209 = sbr.rel (%p206) target = $region12
      $region11: #{tpu_custom_call.1} parent=5 // pred_region
        %s210 = ssub.s32 %s18, 1
        // Predicated region
        $region13: #{tpu_custom_call.1} parent=11 // pred_check
          %p211 = pneg %p65
        $region14: #{tpu_custom_call.1} parent=11 // pred_check_branch
          %213 = sbr.rel (%p211) target = $region16
        $region15: #{tpu_custom_call.1} parent=11 // pred_region
          _
        $region16: #{tpu_custom_call.1} parent=11 // pred_fallthru
          _
        // Predicated region
        $region17: #{tpu_custom_call.1} parent=11 // pred_check
          %p214 = pneg %p86
        $region18: #{tpu_custom_call.1} parent=11 // pred_check_branch
          %216 = sbr.rel (%p214) target = $region20
        $region19: #{tpu_custom_call.1} parent=11 // pred_region
          _
        $region20: #{tpu_custom_call.1} parent=11 // pred_fallthru
          _
        // Predicated region
        $region21: #{tpu_custom_call.1} parent=11 // pred_check
          %p217 = pneg %p107
        $region22: #{tpu_custom_call.1} parent=11 // pred_check_branch
          %219 = sbr.rel (%p217) target = $region24
        $region23: #{tpu_custom_call.1} parent=11 // pred_region
          _
        $region24: #{tpu_custom_call.1} parent=11 // pred_fallthru
          _
        // Predicated region
        $region25: #{tpu_custom_call.1} parent=11 // pred_check
          %p220 = pneg %p128
        $region26: #{tpu_custom_call.1} parent=11 // pred_check_branch
          %222 = sbr.rel (%p220) target = $region28
        $region27: #{tpu_custom_call.1} parent=11 // pred_region
          _
        $region28: #{tpu_custom_call.1} parent=11 // pred_fallthru
          _
        // Predicated region
        $region29: #{tpu_custom_call.1} parent=11 // pred_check
          %p223 = pneg %p149
        $region30: #{tpu_custom_call.1} parent=11 // pred_check_branch
          %225 = sbr.rel (%p223) target = $region32
        $region31: #{tpu_custom_call.1} parent=11 // pred_region
          _
        $region32: #{tpu_custom_call.1} parent=11 // pred_fallthru
          _
        // Predicated region
        $region33: #{tpu_custom_call.1} parent=11 // pred_check
          %p226 = pneg %p170
        $region34: #{tpu_custom_call.1} parent=11 // pred_check_branch
          %228 = sbr.rel (%p226) target = $region36
        $region35: #{tpu_custom_call.1} parent=11 // pred_region
          _
        $region36: #{tpu_custom_call.1} parent=11 // pred_fallthru
          _
      $region12: #{tpu_custom_call.1} parent=5 // pred_fallthru
        _
      %p229 = scmp.lt.s32.totalorder %s18, 2
      // Predicated region
      $region37: #{tpu_custom_call.1} parent=5 // pred_check
        %p230 = pneg %p229
      $region38: #{tpu_custom_call.1} parent=5 // pred_check_branch
        %232 = sbr.rel (%p230) target = $region40
      $region39: #{tpu_custom_call.1} parent=5 // pred_region
        // Predicated region
        $region41: #{tpu_custom_call.1} parent=39 // pred_check
          %p233 = pneg %p38
        $region42: #{tpu_custom_call.1} parent=39 // pred_check_branch
          %235 = sbr.rel (%p233) target = $region44
        $region43: #{tpu_custom_call.1} parent=39 // pred_region
          %s236 = smul.u32 16, %s18
          %p237 = scmp.lt.s32.totalorder %s236, 31
          %s238 = scalar_select %p237, %s236, 31
          %s239 = smul.addr %s238, 3
          %s240 = smul.addr %s239, 8
          %s241 = scalar_lea.vmem %s0, %s240
          %s242 = smul.u32 16, %s18
        $region44: #{tpu_custom_call.1} parent=39 // pred_fallthru
          _
      $region40: #{tpu_custom_call.1} parent=5 // pred_fallthru
        _
      %p243 = scmp.le.s32.totalorder 1, %s18
      %p244 = scmp.lt.s32.totalorder %s18, 3
      %p245 = pnand %p243, %p244
      %p246 = pneg %p245
      // Predicated region
      $region45: #{tpu_custom_call.1} parent=5 // pred_check
        _
      $region46: #{tpu_custom_call.1} parent=5 // pred_check_branch
        %248 = sbr.rel (%p245) target = $region48
      $region47: #{tpu_custom_call.1} parent=5 // pred_region
        %s249 = ssub.s32 %s18, 1
        %s250 = smul.u32 16, %s23
        %p251 = scmp.lt.s32.totalorder %s250, 31
        %s252 = scalar_select %p251, %s250, 31
        %s253 = smul.addr %s252, 3
        %s254 = smul.addr %s253, 8
        %s255 = scalar_lea.vmem %s0, %s254
        %p256 = pneg %p44
        %p257 = pneg %p41
        %p258 = pneg %p65
        %p259 = pneg %p62
        %p260 = pneg %p86
        %p261 = pneg %p83
        %p262 = pneg %p107
        %p263 = pneg %p104
        %p264 = pneg %p128
        %p265 = pneg %p125
        %p266 = pneg %p149
        %p267 = pneg %p146
        %p268 = pneg %p170
        %p269 = pneg %p167
        %p270 = pneg %p196
        %p271 = pneg %p193
        %s272 = sand.u32 %s183, 1
        %s273 = scalar_lea.sflag [#allocation4], %s272
        %s274 = sand.u32 %s183, 1
        %s275 = scalar_lea.vmem [#allocation3], %s274
        %s276 = smul.u32 16, %s23
        %p277 = scmp.lt.s32.totalorder %s276, 31
        %s278 = scalar_select %p277, %s276, 31
        %s279 = smul.addr %s278, 3
        %s280 = smul.addr %s279, 8
        %s281 = scalar_lea.vmem %s0, %s280
        %s282 = smul.u32 16, %s23
        %v284 = vld [vmem:[%s281] sm:$0xff]
        %v285 = vld [vmem:[%s281 + $0x8] sm:$0xff]
        %v286 = vld [vmem:[%s281 + $0x10] sm:$0xff]
        %v287 = vld [vmem:[%s281 + $0x18] sm:$0xff]
        %v288 = vld [vmem:[%s281 + $0x20] sm:$0xff]
        %v289 = vld [vmem:[%s281 + $0x28] sm:$0xff]
        %v290 = vld [vmem:[%s281 + $0x30] sm:$0xff]
        %v291 = vld [vmem:[%s281 + $0x38] sm:$0xff]
        %v292 = vld [vmem:[%s281 + $0x40] sm:$0xff]
        %v293 = vld [vmem:[%s281 + $0x48] sm:$0xff]
        %v294 = vld [vmem:[%s281 + $0x50] sm:$0xff]
        %v295 = vld [vmem:[%s281 + $0x58] sm:$0xff]
        %v296 = vld [vmem:[%s281 + $0x60] sm:$0xff]
        %v297 = vld [vmem:[%s281 + $0x68] sm:$0xff]
        %v298 = vld [vmem:[%s281 + $0x70] sm:$0xff]
        %v299 = vld [vmem:[%s281 + $0x78] sm:$0xff]
        %v300 = vld [vmem:[%s281 + $0x80] sm:$0xff]
        %v301 = vld [vmem:[%s281 + $0x88] sm:$0xff]
        %v302 = vld [vmem:[%s281 + $0x90] sm:$0xff]
        %v303 = vld [vmem:[%s281 + $0x98] sm:$0xff]
        %v304 = vld [vmem:[%s281 + $0xa0] sm:$0xff]
        %v305 = vld [vmem:[%s281 + $0xa8] sm:$0xff]
        %v306 = vld [vmem:[%s281 + $0xb0] sm:$0xff]
        %v307 = vld [vmem:[%s281 + $0xb8] sm:$0xff]
        %v308 = vld [vmem:[%s281 + $0xc0] sm:$0xff]
        %v309 = vld [vmem:[%s281 + $0xc8] sm:$0xff]
        %v310 = vld [vmem:[%s281 + $0xd0] sm:$0xff]
        %v311 = vld [vmem:[%s281 + $0xd8] sm:$0xff]
        %v312 = vld [vmem:[%s281 + $0xe0] sm:$0xff]
        %v313 = vld [vmem:[%s281 + $0xe8] sm:$0xff]
        %v314 = vld [vmem:[%s281 + $0xf0] sm:$0xff]
        %v315 = vld [vmem:[%s281 + $0xf8] sm:$0xff]
        %v316 = vld [vmem:[%s281 + $0x100] sm:$0xff]
        %v317 = vld [vmem:[%s281 + $0x108] sm:$0xff]
        %v318 = vld [vmem:[%s281 + $0x110] sm:$0xff]
        %v319 = vld [vmem:[%s281 + $0x118] sm:$0xff]
        %v320 = vld [vmem:[%s281 + $0x120] sm:$0xff]
        %v321 = vld [vmem:[%s281 + $0x128] sm:$0xff]
        %v322 = vld [vmem:[%s281 + $0x130] sm:$0xff]
        %v323 = vld [vmem:[%s281 + $0x138] sm:$0xff]
        %v324 = vld [vmem:[%s281 + $0x140] sm:$0xff]
        %v325 = vld [vmem:[%s281 + $0x148] sm:$0xff]
        %v326 = vld [vmem:[%s281 + $0x150] sm:$0xff]
        %v327 = vld [vmem:[%s281 + $0x158] sm:$0xff]
        %v328 = vld [vmem:[%s281 + $0x160] sm:$0xff]
        %v329 = vld [vmem:[%s281 + $0x168] sm:$0xff]
        %v330 = vld [vmem:[%s281 + $0x170] sm:$0xff]
        %v331 = vld [vmem:[%s281 + $0x178] sm:$0xff]
        %v332 = vpack.c.bf16 %v287, %v284
        %v333 = vpack.c.bf16 %v288, %v285
        %v334 = vpack.c.bf16 %v289, %v286
        %v335 = vpack.c.bf16 %v293, %v290
        %v336 = vpack.c.bf16 %v294, %v291
        %v337 = vpack.c.bf16 %v295, %v292
        %v338 = vpack.c.bf16 %v299, %v296
        %v339 = vpack.c.bf16 %v300, %v297
        %v340 = vpack.c.bf16 %v301, %v298
        %v341 = vpack.c.bf16 %v305, %v302
        %v342 = vpack.c.bf16 %v306, %v303
        %v343 = vpack.c.bf16 %v307, %v304
        %v344 = vpack.c.bf16 %v311, %v308
        %v345 = vpack.c.bf16 %v312, %v309
        %v346 = vpack.c.bf16 %v313, %v310
        %v347 = vpack.c.bf16 %v317, %v314
        %v348 = vpack.c.bf16 %v318, %v315
        %v349 = vpack.c.bf16 %v319, %v316
        %v350 = vpack.c.bf16 %v323, %v320
        %v351 = vpack.c.bf16 %v324, %v321
        %v352 = vpack.c.bf16 %v325, %v322
        %v353 = vpack.c.bf16 %v329, %v326
        %v354 = vpack.c.bf16 %v330, %v327
        %v355 = vpack.c.bf16 %v331, %v328
        %v356 = vld [vmem:[%s1] sm:$0xff]
        %v357 = vld [vmem:[%s1 + $0x8] sm:$0xff]
        %v358 = vld [vmem:[%s1 + $0x10] sm:$0xff]
        %v359 = vld [vmem:[%s1 + $0x18] sm:$0xff]
        %v360 = vld [vmem:[%s1 + $0x20] sm:$0xff]
        %v361 = vld [vmem:[%s1 + $0x28] sm:$0xff]
        %v362 = vld [vmem:[%s1 + $0x30] sm:$0xff]
        %v363 = vld [vmem:[%s1 + $0x38] sm:$0xff]
        %v364 = vld [vmem:[%s1 + $0x40] sm:$0xff]
        %v365 = vld [vmem:[%s1 + $0x48] sm:$0xff]
        %v366 = vld [vmem:[%s1 + $0x50] sm:$0xff]
        %v367 = vld [vmem:[%s1 + $0x58] sm:$0xff]
        %v368 = vld [vmem:[%s1 + $0x60] sm:$0xff]
        %v369 = vld [vmem:[%s1 + $0x68] sm:$0xff]
        %v370 = vld [vmem:[%s1 + $0x70] sm:$0xff]
        %v371 = vld [vmem:[%s1 + $0x78] sm:$0xff]
        %v372 = vld [vmem:[%s1 + $0x80] sm:$0xff]
        %v373 = vld [vmem:[%s1 + $0x88] sm:$0xff]
        %v374 = vld [vmem:[%s1 + $0x90] sm:$0xff]
        %v375 = vld [vmem:[%s1 + $0x98] sm:$0xff]
        %v376 = vld [vmem:[%s1 + $0xa0] sm:$0xff]
        %v377 = vld [vmem:[%s1 + $0xa8] sm:$0xff]
        %v378 = vld [vmem:[%s1 + $0xb0] sm:$0xff]
        %v379 = vld [vmem:[%s1 + $0xb8] sm:$0xff]
        %v380 = vld [vmem:[%s1 + $0xc0] sm:$0xff]
        %v381 = vld [vmem:[%s1 + $0xc8] sm:$0xff]
        %v382 = vld [vmem:[%s1 + $0xd0] sm:$0xff]
        %v383 = vld [vmem:[%s1 + $0xd8] sm:$0xff]
        %v384 = vld [vmem:[%s1 + $0xe0] sm:$0xff]
        %v385 = vld [vmem:[%s1 + $0xe8] sm:$0xff]
        %v386 = vld [vmem:[%s1 + $0xf0] sm:$0xff]
        %v387 = vld [vmem:[%s1 + $0xf8] sm:$0xff]
        %v388 = vld [vmem:[%s1 + $0x100] sm:$0xff]
        %v389 = vld [vmem:[%s1 + $0x108] sm:$0xff]
        %v390 = vld [vmem:[%s1 + $0x110] sm:$0xff]
        %v391 = vld [vmem:[%s1 + $0x118] sm:$0xff]
        %v392 = vld [vmem:[%s1 + $0x120] sm:$0xff]
        %v393 = vld [vmem:[%s1 + $0x128] sm:$0xff]
        %v394 = vld [vmem:[%s1 + $0x130] sm:$0x77]
        %v395 = vld [vmem:[%s2] sm:$0x3]
        %v397 = vlaneseq
        %v398 = vshrl.u32 %v397, 7
        %v399 = vsub.s32 0, %v398
        %v400 = vrot.slane %v395, %v399
        %v401 = vlaneseq
        %v402 = vshrl.u32 %v401, 7
        %v403 = vsub.s32 1, %v402
        %v404 = vrot.slane %v395, %v403
        %v446 = vunpack.c.l.b16 %v356
        %v447 = vunpack.c.h.b16 %v356
        %v448 = vunpack.c.l.b16 %v357
        %v449 = vunpack.c.h.b16 %v357
        %v450 = vunpack.c.l.b16 %v358
        %v451 = vunpack.c.h.b16 %v358
        %v452 = vunpack.c.l.b16 %v359
        %v453 = vunpack.c.h.b16 %v359
        %v454 = vunpack.c.l.b16 %v360
        %v455 = vunpack.c.h.b16 %v360
        %v456 = vunpack.c.l.b16 %v361
        %v457 = vunpack.c.h.b16 %v361
        %v458 = vunpack.c.l.b16 %v362
        %v459 = vunpack.c.h.b16 %v362
        %v460 = vunpack.c.l.b16 %v363
        %v461 = vunpack.c.h.b16 %v363
        %v462 = vunpack.c.l.b16 %v364
        %v463 = vunpack.c.h.b16 %v364
        %v464 = vunpack.c.l.b16 %v365
        %v465 = vunpack.c.h.b16 %v365
        %v466 = vunpack.c.l.b16 %v366
        %v467 = vunpack.c.h.b16 %v366
        %v468 = vunpack.c.l.b16 %v367
        %v469 = vunpack.c.h.b16 %v367
        %v470 = vunpack.c.l.b16 %v368
        %v471 = vunpack.c.h.b16 %v368
        %v472 = vunpack.c.l.b16 %v369
        %v473 = vunpack.c.h.b16 %v369
        %v474 = vunpack.c.l.b16 %v370
        %v475 = vunpack.c.h.b16 %v370
        %v476 = vunpack.c.l.b16 %v371
        %v477 = vunpack.c.h.b16 %v371
        %v478 = vunpack.c.l.b16 %v372
        %v479 = vunpack.c.h.b16 %v372
        %v480 = vunpack.c.l.b16 %v373
        %v481 = vunpack.c.h.b16 %v373
        %v482 = vunpack.c.l.b16 %v374
        %v483 = vunpack.c.h.b16 %v374
        %v484 = vunpack.c.l.b16 %v375
        %v485 = vunpack.c.h.b16 %v375
        %v486 = vunpack.c.l.b16 %v376
        %v487 = vunpack.c.h.b16 %v376
        %v488 = vunpack.c.l.b16 %v377
        %v489 = vunpack.c.h.b16 %v377
        %v490 = vunpack.c.l.b16 %v378
        %v491 = vunpack.c.h.b16 %v378
        %v492 = vunpack.c.l.b16 %v379
        %v493 = vunpack.c.h.b16 %v379
        %v494 = vunpack.c.l.b16 %v380
        %v495 = vunpack.c.h.b16 %v380
        %v496 = vunpack.c.l.b16 %v381
        %v497 = vunpack.c.h.b16 %v381
        %v498 = vunpack.c.l.b16 %v382
        %v499 = vunpack.c.h.b16 %v382
        %v500 = vunpack.c.l.b16 %v383
        %v501 = vunpack.c.h.b16 %v383
        %v502 = vunpack.c.l.b16 %v384
        %v503 = vunpack.c.h.b16 %v384
        %v504 = vunpack.c.l.b16 %v385
        %v505 = vunpack.c.h.b16 %v385
        %v506 = vunpack.c.l.b16 %v386
        %v507 = vunpack.c.h.b16 %v386
        %v508 = vunpack.c.l.b16 %v387
        %v509 = vunpack.c.h.b16 %v387
        %v510 = vunpack.c.l.b16 %v388
        %v511 = vunpack.c.h.b16 %v388
        %v512 = vunpack.c.l.b16 %v389
        %v513 = vunpack.c.h.b16 %v389
        %v514 = vunpack.c.l.b16 %v390
        %v515 = vunpack.c.h.b16 %v390
        %v516 = vunpack.c.l.b16 %v391
        %v517 = vunpack.c.h.b16 %v391
        %v518 = vunpack.c.l.b16 %v392
        %v519 = vunpack.c.h.b16 %v392
        %v520 = vunpack.c.l.b16 %v393
        %v521 = vunpack.c.h.b16 %v393
        %v522 = vunpack.c.l.b16 %v394
        %v523 = vunpack.c.h.b16 %v394
        %v524 = vpack.c.b16 %v448, %v446
        %v525 = vpack.c.b16 %v449, %v447
        %v526 = vpack.c.b16 %v452, %v450
        %v527 = vpack.c.b16 %v453, %v451
        %v528 = vpack.c.b16 %v456, %v454
        %v529 = vpack.c.b16 %v457, %v455
        %v530 = vpack.c.b16 %v460, %v458
        %v531 = vpack.c.b16 %v461, %v459
        %v532 = vpack.c.b16 %v464, %v462
        %v533 = vpack.c.b16 %v465, %v463
        %v534 = vpack.c.b16 %v468, %v466
        %v535 = vpack.c.b16 %v469, %v467
        %v536 = vpack.c.b16 %v472, %v470
        %v537 = vpack.c.b16 %v473, %v471
        %v538 = vpack.c.b16 %v476, %v474
        %v539 = vpack.c.b16 %v477, %v475
        %v540 = vpack.c.b16 %v480, %v478
        %v541 = vpack.c.b16 %v481, %v479
        %v542 = vpack.c.b16 %v484, %v482
        %v543 = vpack.c.b16 %v485, %v483
        %v544 = vpack.c.b16 %v488, %v486
        %v545 = vpack.c.b16 %v489, %v487
        %v546 = vpack.c.b16 %v492, %v490
        %v547 = vpack.c.b16 %v493, %v491
        %v548 = vpack.c.b16 %v496, %v494
        %v549 = vpack.c.b16 %v497, %v495
        %v550 = vpack.c.b16 %v500, %v498
        %v551 = vpack.c.b16 %v501, %v499
        %v552 = vpack.c.b16 %v504, %v502
        %v553 = vpack.c.b16 %v505, %v503
        %v554 = vpack.c.b16 %v508, %v506
        %v555 = vpack.c.b16 %v509, %v507
        %v556 = vpack.c.b16 %v512, %v510
        %v557 = vpack.c.b16 %v513, %v511
        %v558 = vpack.c.b16 %v516, %v514
        %v559 = vpack.c.b16 %v517, %v515
        %v560 = vpack.c.b16 %v520, %v518
        %v561 = vpack.c.b16 %v521, %v519
        %v562 = vpack.c.b16 %v522, %v522
        %v563 = vpack.c.b16 %v523, %v523
        %vm602 = vcmask 441344
        %v604 = vsel %vm602, %v334, 0
        %v607 = vsel %vm602, %v337, 0
        %v610 = vsel %vm602, %v340, 0
        %v613 = vsel %vm602, %v343, 0
        %v616 = vsel %vm602, %v346, 0
        %v619 = vsel %vm602, %v349, 0
        %v622 = vsel %vm602, %v352, 0
        %v625 = vsel %vm602, %v355, 0
        %vm627 = vcmask 1042432
        %v629 = vsel %vm627, %v562, 0
        %v632 = vsel %vm627, %v563, 0
        %634 = vmatprep.subr.bf16.mxu0 %v525
        %635 = vmatpush1.bf16.msra.mxu0 %v524
        %636 = vmatprep.subr.bf16.mxu0 %v527
        %637 = vmatpush1.bf16.msra.mxu0 %v526
        %638 = vmatprep.subr.bf16.mxu0 %v529
        %639 = vmatpush1.bf16.msra.mxu0 %v528
        %640 = vmatprep.subr.bf16.mxu0 %v531
        %641 = vmatpush1.bf16.msra.mxu0 %v530
        %642 = vmatprep.subr.bf16.mxu0 %v533
        %643 = vmatpush1.bf16.msra.mxu0 %v532
        %644 = vmatprep.subr.bf16.mxu0 %v535
        %645 = vmatpush1.bf16.msra.mxu0 %v534
        %646 = vmatprep.subr.bf16.mxu0 %v537
        %647 = vmatpush1.bf16.msra.mxu0 %v536
        %648 = vmatprep.subr.bf16.mxu0 %v539
        %649 = vmatpush1.bf16.msra.mxu0 %v538
        %650 = vmatprep.subr.bf16.mxu0 %v541
        %651 = vmatpush1.bf16.msra.mxu0 %v540
        %652 = vmatprep.subr.bf16.mxu0 %v543
        %653 = vmatpush1.bf16.msra.mxu0 %v542
        %654 = vmatprep.subr.bf16.mxu0 %v545
        %655 = vmatpush1.bf16.msra.mxu0 %v544
        %656 = vmatprep.subr.bf16.mxu0 %v547
        %657 = vmatpush1.bf16.msra.mxu0 %v546
        %658 = vmatprep.subr.bf16.mxu0 %v549
        %659 = vmatpush1.bf16.msra.mxu0 %v548
        %660 = vmatprep.subr.bf16.mxu0 %v551
        %661 = vmatpush1.bf16.msra.mxu0 %v550
        %662 = vmatprep.subr.bf16.mxu0 %v553
        %663 = vmatpush1.bf16.msra.mxu0 %v552
        %664 = vmatprep.subr.bf16.mxu0 %v555
        %665 = vmatpush1.bf16.msra.mxu0 %v554
        %666 = vmatprep.mubr.bf16.mxu0 %v333
        %667 = vmatmul.mubr.bf16.gmra.mrb[0].mxu0 %v332
        %v668 = vpop.f32.mrb[0].mxu0
        %v669 = vadd.f32 %v400, %v668
        %v670 = vpop.f32.mrb[0].mxu0
        %v671 = vadd.f32 %v404, %v670
        %v672 = vpop.f32.mrb[0].mxu0
        %v673 = vadd.f32 %v400, %v672
        %v674 = vpop.f32.mrb[0].mxu0
        %v675 = vadd.f32 %v404, %v674
        %676 = vmatprep.mubr.bf16.mxu0 %v336
        %677 = vmatmul.mubr.bf16.gmra.mrb[0].mxu0 %v335
        %v678 = vpop.f32.mrb[0].mxu0
        %v679 = vadd.f32 %v400, %v678
        %v680 = vpop.f32.mrb[0].mxu0
        %v681 = vadd.f32 %v404, %v680
        %v682 = vpop.f32.mrb[0].mxu0
        %v683 = vadd.f32 %v400, %v682
        %v684 = vpop.f32.mrb[0].mxu0
        %v685 = vadd.f32 %v404, %v684
        %686 = vmatprep.mubr.bf16.mxu0 %v339
        %687 = vmatmul.mubr.bf16.gmra.mrb[0].mxu0 %v338
        %v688 = vpop.f32.mrb[0].mxu0
        %v689 = vadd.f32 %v400, %v688
        %v690 = vpop.f32.mrb[0].mxu0
        %v691 = vadd.f32 %v404, %v690
        %v692 = vpop.f32.mrb[0].mxu0
        %v693 = vadd.f32 %v400, %v692
        %v694 = vpop.f32.mrb[0].mxu0
        %v695 = vadd.f32 %v404, %v694
        %696 = vmatprep.mubr.bf16.mxu0 %v342
        %697 = vmatmul.mubr.bf16.gmra.mrb[0].mxu0 %v341
        %v698 = vpop.f32.mrb[0].mxu0
        %v699 = vadd.f32 %v400, %v698
        %v700 = vpop.f32.mrb[0].mxu0
        %v701 = vadd.f32 %v404, %v700
        %v702 = vpop.f32.mrb[0].mxu0
        %v703 = vadd.f32 %v400, %v702
        %v704 = vpop.f32.mrb[0].mxu0
        %v705 = vadd.f32 %v404, %v704
        %706 = vmatprep.mubr.bf16.mxu0 %v345
        %707 = vmatmul.mubr.bf16.gmra.mrb[0].mxu0 %v344
        %v708 = vpop.f32.mrb[0].mxu0
        %v709 = vadd.f32 %v400, %v708
        %v710 = vpop.f32.mrb[0].mxu0
        %v711 = vadd.f32 %v404, %v710
        %v712 = vpop.f32.mrb[0].mxu0
        %v713 = vadd.f32 %v400, %v712
        %v714 = vpop.f32.mrb[0].mxu0
        %v715 = vadd.f32 %v404, %v714
        %716 = vmatprep.mubr.bf16.mxu0 %v348
        %717 = vmatmul.mubr.bf16.gmra.mrb[0].mxu0 %v347
        %v718 = vpop.f32.mrb[0].mxu0
        %v719 = vadd.f32 %v400, %v718
        %v720 = vpop.f32.mrb[0].mxu0
        %v721 = vadd.f32 %v404, %v720
        %v722 = vpop.f32.mrb[0].mxu0
        %v723 = vadd.f32 %v400, %v722
        %v724 = vpop.f32.mrb[0].mxu0
        %v725 = vadd.f32 %v404, %v724
        %726 = vmatprep.mubr.bf16.mxu0 %v351
        %727 = vmatmul.mubr.bf16.gmra.mrb[0].mxu0 %v350
        %v728 = vpop.f32.mrb[0].mxu0
        %v729 = vadd.f32 %v400, %v728
        %v730 = vpop.f32.mrb[0].mxu0
        %v731 = vadd.f32 %v404, %v730
        %v732 = vpop.f32.mrb[0].mxu0
        %v733 = vadd.f32 %v400, %v732
        %v734 = vpop.f32.mrb[0].mxu0
        %v735 = vadd.f32 %v404, %v734
        %736 = vmatprep.mubr.bf16.mxu0 %v354
        %737 = vmatmul.mubr.bf16.gmra.mrb[0].mxu0 %v353
        %v738 = vpop.f32.mrb[0].mxu0
        %v739 = vadd.f32 %v400, %v738
        %v740 = vpop.f32.mrb[0].mxu0
        %v741 = vadd.f32 %v404, %v740
        %v742 = vpop.f32.mrb[0].mxu0
        %v743 = vadd.f32 %v400, %v742
        %v744 = vpop.f32.mrb[0].mxu0
        %v745 = vadd.f32 %v404, %v744
        %746 = vdwg.mxu0
        %747 = vmatprep.subr.bf16.mxu0 %v557
        %748 = vmatpush1.bf16.msra.mxu0 %v556
        %749 = vmatprep.subr.bf16.mxu0 %v559
        %750 = vmatpush1.bf16.msra.mxu0 %v558
        %751 = vmatprep.subr.bf16.mxu0 %v561
        %752 = vmatpush1.bf16.msra.mxu0 %v560
        %753 = vmatprep.subr.bf16.mxu0 %v632
        %754 = vmatpush1.bf16.msra.mxu0 %v629
        %755 = vmatprep.subr.bf16.mxu0 0
        %756 = vmatpush1.bf16.msra.mxu0 0
        %757 = vmatprep.subr.bf16.mxu0 0
        %758 = vmatpush1.bf16.msra.mxu0 0
        %759 = vmatprep.subr.bf16.mxu0 0
        %760 = vmatpush1.bf16.msra.mxu0 0
        %761 = vmatprep.subr.bf16.mxu0 0
        %762 = vmatpush1.bf16.msra.mxu0 0
        %763 = vmatprep.subr.bf16.mxu0 0
        %764 = vmatpush1.bf16.msra.mxu0 0
        %765 = vmatprep.subr.bf16.mxu0 0
        %766 = vmatpush1.bf16.msra.mxu0 0
        %767 = vmatprep.subr.bf16.mxu0 0
        %768 = vmatpush1.bf16.msra.mxu0 0
        %769 = vmatprep.subr.bf16.mxu0 0
        %770 = vmatpush1.bf16.msra.mxu0 0
        %771 = vmatprep.subr.bf16.mxu0 0
        %772 = vmatpush1.bf16.msra.mxu0 0
        %773 = vmatprep.subr.bf16.mxu0 0
        %774 = vmatpush1.bf16.msra.mxu0 0
        %775 = vmatprep.subr.bf16.mxu0 0
        %776 = vmatpush1.bf16.msra.mxu0 0
        %777 = vmatprep.subr.bf16.mxu0 0
        %778 = vmatpush1.bf16.msra.mxu0 0
        %779 = vmatprep.mubr.bf16.mxu0 0
        %780 = vmatmul.mubr.bf16.gmra.mrb[0].mxu0 %v604
        %v781 = vpop.f32.mrb[0].mxu0
        %v782 = vadd.f32 %v669, %v781
        %v783 = vpop.f32.mrb[0].mxu0
        %v784 = vadd.f32 %v671, %v783
        %v785 = vpop.f32.mrb[0].mxu0
        %v786 = vadd.f32 %v673, %v785
        %v787 = vpop.f32.mrb[0].mxu0
        %v788 = vadd.f32 %v675, %v787
        %789 = vmatprep.mubr.bf16.mxu0 0
        %790 = vmatmul.mubr.bf16.gmra.mrb[0].mxu0 %v607
        %v791 = vpop.f32.mrb[0].mxu0
        %v792 = vadd.f32 %v679, %v791
        %v793 = vpop.f32.mrb[0].mxu0
        %v794 = vadd.f32 %v681, %v793
        %v795 = vpop.f32.mrb[0].mxu0
        %v796 = vadd.f32 %v683, %v795
        %v797 = vpop.f32.mrb[0].mxu0
        %v798 = vadd.f32 %v685, %v797
        %799 = vmatprep.mubr.bf16.mxu0 0
        %800 = vmatmul.mubr.bf16.gmra.mrb[0].mxu0 %v610
        %v801 = vpop.f32.mrb[0].mxu0
        %v802 = vadd.f32 %v689, %v801
        %v803 = vpop.f32.mrb[0].mxu0
        %v804 = vadd.f32 %v691, %v803
        %v805 = vpop.f32.mrb[0].mxu0
        %v806 = vadd.f32 %v693, %v805
        %v807 = vpop.f32.mrb[0].mxu0
        %v808 = vadd.f32 %v695, %v807
        %809 = vmatprep.mubr.bf16.mxu0 0
        %810 = vmatmul.mubr.bf16.gmra.mrb[0].mxu0 %v613
        %v811 = vpop.f32.mrb[0].mxu0
        %v812 = vadd.f32 %v699, %v811
        %v813 = vpop.f32.mrb[0].mxu0
        %v814 = vadd.f32 %v701, %v813
        %v815 = vpop.f32.mrb[0].mxu0
        %v816 = vadd.f32 %v703, %v815
        %v817 = vpop.f32.mrb[0].mxu0
        %v818 = vadd.f32 %v705, %v817
        %819 = vmatprep.mubr.bf16.mxu0 0
        %820 = vmatmul.mubr.bf16.gmra.mrb[0].mxu0 %v616
        %v821 = vpop.f32.mrb[0].mxu0
        %v822 = vadd.f32 %v709, %v821
        %v823 = vpop.f32.mrb[0].mxu0
        %v824 = vadd.f32 %v711, %v823
        %v825 = vpop.f32.mrb[0].mxu0
        %v826 = vadd.f32 %v713, %v825
        %v827 = vpop.f32.mrb[0].mxu0
        %v828 = vadd.f32 %v715, %v827
        %829 = vmatprep.mubr.bf16.mxu0 0
        %830 = vmatmul.mubr.bf16.gmra.mrb[0].mxu0 %v619
        %v831 = vpop.f32.mrb[0].mxu0
        %v832 = vadd.f32 %v719, %v831
        %v833 = vpop.f32.mrb[0].mxu0
        %v834 = vadd.f32 %v721, %v833
        %v835 = vpop.f32.mrb[0].mxu0
        %v836 = vadd.f32 %v723, %v835
        %v837 = vpop.f32.mrb[0].mxu0
        %v838 = vadd.f32 %v725, %v837
        %839 = vmatprep.mubr.bf16.mxu0 0
        %840 = vmatmul.mubr.bf16.gmra.mrb[0].mxu0 %v622
        %v841 = vpop.f32.mrb[0].mxu0
        %v842 = vadd.f32 %v729, %v841
        %v843 = vpop.f32.mrb[0].mxu0
        %v844 = vadd.f32 %v731, %v843
        %v845 = vpop.f32.mrb[0].mxu0
        %v846 = vadd.f32 %v733, %v845
        %v847 = vpop.f32.mrb[0].mxu0
        %v848 = vadd.f32 %v735, %v847
        %849 = vmatprep.mubr.bf16.mxu0 0
        %850 = vmatmul.mubr.bf16.gmra.mrb[0].mxu0 %v625
        %v851 = vpop.f32.mrb[0].mxu0
        %v852 = vadd.f32 %v739, %v851
        %v853 = vpop.f32.mrb[0].mxu0
        %v854 = vadd.f32 %v741, %v853
        %v855 = vpop.f32.mrb[0].mxu0
        %v856 = vadd.f32 %v743, %v855
        %v857 = vpop.f32.mrb[0].mxu0
        %v858 = vadd.f32 %v745, %v857
        %859 = vdwg.mxu0
        %v860 = vmax.f32 %v782, 0.0
        %v861 = vmax.f32 %v784, 0.0
        %v862 = vmax.f32 %v786, 0.0
        %v863 = vmax.f32 %v788, 0.0
        %v864 = vmax.f32 %v792, 0.0
        %v865 = vmax.f32 %v794, 0.0
        %v866 = vmax.f32 %v796, 0.0
        %v867 = vmax.f32 %v798, 0.0
        %v868 = vmax.f32 %v802, 0.0
        %v869 = vmax.f32 %v804, 0.0
        %v870 = vmax.f32 %v806, 0.0
        %v871 = vmax.f32 %v808, 0.0
        %v872 = vmax.f32 %v812, 0.0
        %v873 = vmax.f32 %v814, 0.0
        %v874 = vmax.f32 %v816, 0.0
        %v875 = vmax.f32 %v818, 0.0
        %v876 = vmax.f32 %v822, 0.0
        %v877 = vmax.f32 %v824, 0.0
        %v878 = vmax.f32 %v826, 0.0
        %v879 = vmax.f32 %v828, 0.0
        %v880 = vmax.f32 %v832, 0.0
        %v881 = vmax.f32 %v834, 0.0
        %v882 = vmax.f32 %v836, 0.0
        %v883 = vmax.f32 %v838, 0.0
        %v884 = vmax.f32 %v842, 0.0
        %v885 = vmax.f32 %v844, 0.0
        %v886 = vmax.f32 %v846, 0.0
        %v887 = vmax.f32 %v848, 0.0
        %v888 = vmax.f32 %v852, 0.0
        %v889 = vmax.f32 %v854, 0.0
        %v890 = vmax.f32 %v856, 0.0
        %v891 = vmax.f32 %v858, 0.0
        %v892 = vpack.c.bf16 %v862, %v860
        %v893 = vpack.c.bf16 %v863, %v861
        %v894 = vpack.c.bf16 %v866, %v864
        %v895 = vpack.c.bf16 %v867, %v865
        %v896 = vpack.c.bf16 %v870, %v868
        %v897 = vpack.c.bf16 %v871, %v869
        %v898 = vpack.c.bf16 %v874, %v872
        %v899 = vpack.c.bf16 %v875, %v873
        %v900 = vpack.c.bf16 %v878, %v876
        %v901 = vpack.c.bf16 %v879, %v877
        %v902 = vpack.c.bf16 %v882, %v880
        %v903 = vpack.c.bf16 %v883, %v881
        %v904 = vpack.c.bf16 %v886, %v884
        %v905 = vpack.c.bf16 %v887, %v885
        %v906 = vpack.c.bf16 %v890, %v888
        %v907 = vpack.c.bf16 %v891, %v889
        %v908 = vld [vmem:[%s3] sm:$0xf]
        %v909 = vld [vmem:[%s3 + $0x4] sm:$0xf]
        %v910 = vld [vmem:[%s3 + $0x8] sm:$0xf]
        %v911 = vld [vmem:[%s3 + $0xc] sm:$0xf]
        %v912 = vld [vmem:[%s3 + $0x10] sm:$0xf]
        %v913 = vld [vmem:[%s3 + $0x14] sm:$0xf]
        %v914 = vld [vmem:[%s3 + $0x18] sm:$0xf]
        %v915 = vld [vmem:[%s3 + $0x1c] sm:$0xf]
        %v916 = vld [vmem:[%s3 + $0x20] sm:$0xf]
        %v917 = vld [vmem:[%s3 + $0x24] sm:$0xf]
        %v918 = vld [vmem:[%s3 + $0x28] sm:$0xf]
        %v919 = vld [vmem:[%s3 + $0x2c] sm:$0xf]
        %v920 = vld [vmem:[%s3 + $0x30] sm:$0xf]
        %v921 = vld [vmem:[%s3 + $0x34] sm:$0xf]
        %v922 = vld [vmem:[%s3 + $0x38] sm:$0xf]
        %v923 = vld [vmem:[%s3 + $0x3c] sm:$0xf]
        %v924 = vld [vmem:[%s3 + $0x40] sm:$0xf]
        %v925 = vld [vmem:[%s3 + $0x44] sm:$0xf]
        %v926 = vld [vmem:[%s3 + $0x48] sm:$0x7]
        %v927 = vld [vmem:[%s4] sm:$0x1]
        %v929 = vlaneseq
        %v930 = vshrl.u32 %v929, 7
        %v931 = vsub.s32 0, %v930
        %v932 = vrot.slane %v927, %v931
        %v953 = vunpack.c.l.b16 %v908
        %v954 = vunpack.c.l.b16 %v909
        %v955 = vunpack.c.l.b16 %v910
        %v956 = vunpack.c.l.b16 %v911
        %v957 = vunpack.c.l.b16 %v912
        %v958 = vunpack.c.l.b16 %v913
        %v959 = vunpack.c.l.b16 %v914
        %v960 = vunpack.c.l.b16 %v915
        %v961 = vunpack.c.l.b16 %v916
        %v962 = vunpack.c.l.b16 %v917
        %v963 = vunpack.c.l.b16 %v918
        %v964 = vunpack.c.l.b16 %v919
        %v965 = vunpack.c.l.b16 %v920
        %v966 = vunpack.c.l.b16 %v921
        %v967 = vunpack.c.l.b16 %v922
        %v968 = vunpack.c.l.b16 %v923
        %v969 = vunpack.c.l.b16 %v924
        %v970 = vunpack.c.l.b16 %v925
        %v971 = vunpack.c.l.b16 %v926
        %v972 = vpack.c.b16 %v954, %v953
        %v973 = vpack.c.b16 %v956, %v955
        %v974 = vpack.c.b16 %v958, %v957
        %v975 = vpack.c.b16 %v960, %v959
        %v976 = vpack.c.b16 %v962, %v961
        %v977 = vpack.c.b16 %v964, %v963
        %v978 = vpack.c.b16 %v966, %v965
        %v979 = vpack.c.b16 %v968, %v967
        %v980 = vpack.c.b16 %v970, %v969
        %v981 = vpack.c.b16 %v971, %v971
        %vm991 = vcmask 179200
        %v993 = vsel %vm991, %v893, 0
        %v996 = vsel %vm991, %v895, 0
        %v999 = vsel %vm991, %v897, 0
        %v1002 = vsel %vm991, %v899, 0
        %v1005 = vsel %vm991, %v901, 0
        %v1008 = vsel %vm991, %v903, 0
        %v1011 = vsel %vm991, %v905, 0
        %v1014 = vsel %vm991, %v907, 0
        %v1017 = vsel %vm627, %v981, 0
        %1019 = vmatprep.subr.bf16.mxu0 0
        %1020 = vmatpush1.bf16.msra.mxu0 %v972
        %1021 = vmatprep.subr.bf16.mxu0 0
        %1022 = vmatpush1.bf16.msra.mxu0 %v973
        %1023 = vmatprep.subr.bf16.mxu0 0
        %1024 = vmatpush1.bf16.msra.mxu0 %v974
        %1025 = vmatprep.subr.bf16.mxu0 0
        %1026 = vmatpush1.bf16.msra.mxu0 %v975
        %1027 = vmatprep.subr.bf16.mxu0 0
        %1028 = vmatpush1.bf16.msra.mxu0 %v976
        %1029 = vmatprep.subr.bf16.mxu0 0
        %1030 = vmatpush1.bf16.msra.mxu0 %v977
        %1031 = vmatprep.subr.bf16.mxu0 0
        %1032 = vmatpush1.bf16.msra.mxu0 %v978
        %1033 = vmatprep.subr.bf16.mxu0 0
        %1034 = vmatpush1.bf16.msra.mxu0 %v979
        %1035 = vmatprep.subr.bf16.mxu0 0
        %1036 = vmatpush1.bf16.msra.mxu0 %v980
        %1037 = vmatprep.subr.bf16.mxu0 0
        %1038 = vmatpush1.bf16.msra.mxu0 %v1017
        %1039 = vmatprep.subr.bf16.mxu0 0
        %1040 = vmatpush1.bf16.msra.mxu0 0
        %1041 = vmatprep.subr.bf16.mxu0 0
        %1042 = vmatpush1.bf16.msra.mxu0 0
        %1043 = vmatprep.subr.bf16.mxu0 0
        %1044 = vmatpush1.bf16.msra.mxu0 0
        %1045 = vmatprep.subr.bf16.mxu0 0
        %1046 = vmatpush1.bf16.msra.mxu0 0
        %1047 = vmatprep.subr.bf16.mxu0 0
        %1048 = vmatpush1.bf16.msra.mxu0 0
        %1049 = vmatprep.subr.bf16.mxu0 0
        %1050 = vmatpush1.bf16.msra.mxu0 0
        %1051 = vmatprep.mubr.bf16.mxu0 %v993
        %1052 = vmatmul.mubr.bf16.gmra.mrb[0].mxu0 %v892
        %v1053 = vpop.f32.mrb[0].mxu0
        %v1054 = vadd.f32 %v932, %v1053
        %v1055 = vpop.f32.mrb[0].mxu0
        %v1056 = vpop.f32.mrb[0].mxu0
        %v1057 = vadd.f32 %v932, %v1056
        %v1058 = vpop.f32.mrb[0].mxu0
        %1059 = vmatprep.mubr.bf16.mxu0 %v996
        %1060 = vmatmul.mubr.bf16.gmra.mrb[0].mxu0 %v894
        %v1061 = vpop.f32.mrb[0].mxu0
        %v1062 = vadd.f32 %v932, %v1061
        %v1063 = vpop.f32.mrb[0].mxu0
        %v1064 = vpop.f32.mrb[0].mxu0
        %v1065 = vadd.f32 %v932, %v1064
        %v1066 = vpop.f32.mrb[0].mxu0
        %1067 = vmatprep.mubr.bf16.mxu0 %v999
        %1068 = vmatmul.mubr.bf16.gmra.mrb[0].mxu0 %v896
        %v1069 = vpop.f32.mrb[0].mxu0
        %v1070 = vadd.f32 %v932, %v1069
        %v1071 = vpop.f32.mrb[0].mxu0
        %v1072 = vpop.f32.mrb[0].mxu0
        %v1073 = vadd.f32 %v932, %v1072
        %v1074 = vpop.f32.mrb[0].mxu0
        %1075 = vmatprep.mubr.bf16.mxu0 %v1002
        %1076 = vmatmul.mubr.bf16.gmra.mrb[0].mxu0 %v898
        %v1077 = vpop.f32.mrb[0].mxu0
        %v1078 = vadd.f32 %v932, %v1077
        %v1079 = vpop.f32.mrb[0].mxu0
        %v1080 = vpop.f32.mrb[0].mxu0
        %v1081 = vadd.f32 %v932, %v1080
        %v1082 = vpop.f32.mrb[0].mxu0
        %1083 = vmatprep.mubr.bf16.mxu0 %v1005
        %1084 = vmatmul.mubr.bf16.gmra.mrb[0].mxu0 %v900
        %v1085 = vpop.f32.mrb[0].mxu0
        %v1086 = vadd.f32 %v932, %v1085
        %v1087 = vpop.f32.mrb[0].mxu0
        %v1088 = vpop.f32.mrb[0].mxu0
        %v1089 = vadd.f32 %v932, %v1088
        %v1090 = vpop.f32.mrb[0].mxu0
        %1091 = vmatprep.mubr.bf16.mxu0 %v1008
        %1092 = vmatmul.mubr.bf16.gmra.mrb[0].mxu0 %v902
        %v1093 = vpop.f32.mrb[0].mxu0
        %v1094 = vadd.f32 %v932, %v1093
        %v1095 = vpop.f32.mrb[0].mxu0
        %v1096 = vpop.f32.mrb[0].mxu0
        %v1097 = vadd.f32 %v932, %v1096
        %v1098 = vpop.f32.mrb[0].mxu0
        %1099 = vmatprep.mubr.bf16.mxu0 %v1011
        %1100 = vmatmul.mubr.bf16.gmra.mrb[0].mxu0 %v904
        %v1101 = vpop.f32.mrb[0].mxu0
        %v1102 = vadd.f32 %v932, %v1101
        %v1103 = vpop.f32.mrb[0].mxu0
        %v1104 = vpop.f32.mrb[0].mxu0
        %v1105 = vadd.f32 %v932, %v1104
        %v1106 = vpop.f32.mrb[0].mxu0
        %1107 = vmatprep.mubr.bf16.mxu0 %v1014
        %1108 = vmatmul.mubr.bf16.gmra.mrb[0].mxu0 %v906
        %v1109 = vpop.f32.mrb[0].mxu0
        %v1110 = vadd.f32 %v932, %v1109
        %v1111 = vpop.f32.mrb[0].mxu0
        %v1112 = vpop.f32.mrb[0].mxu0
        %v1113 = vadd.f32 %v932, %v1112
        %v1114 = vpop.f32.mrb[0].mxu0
        %1115 = vdwg.mxu0
        %v1116 = vmax.f32 %v1054, 0.0
        %v1117 = vmax.f32 %v1057, 0.0
        %v1118 = vmax.f32 %v1062, 0.0
        %v1119 = vmax.f32 %v1065, 0.0
        %v1120 = vmax.f32 %v1070, 0.0
        %v1121 = vmax.f32 %v1073, 0.0
        %v1122 = vmax.f32 %v1078, 0.0
        %v1123 = vmax.f32 %v1081, 0.0
        %v1124 = vmax.f32 %v1086, 0.0
        %v1125 = vmax.f32 %v1089, 0.0
        %v1126 = vmax.f32 %v1094, 0.0
        %v1127 = vmax.f32 %v1097, 0.0
        %v1128 = vmax.f32 %v1102, 0.0
        %v1129 = vmax.f32 %v1105, 0.0
        %v1130 = vmax.f32 %v1110, 0.0
        %v1131 = vmax.f32 %v1113, 0.0
        %v1132 = vld [vmem:[%s5] sm:$0x1]
        %v1133 = vld [vmem:[#allocation2] sm:$0x1]
        %1135 = vset.pattern.permute.xlu0 0
        %1136 = vperm.xlu0 %1135, %v1133
        %v1137 = vpop.permute.xlu0 %1136
        %v1139 = vlaneseq
        %v1140 = vshrl.u32 %v1139, 7
        %v1141 = vsub.s32 0, %v1140
        %v1142 = vrot.slane %v1137, %v1141
        %vm1143 = vcmask 490496
        %v1145 = vsel %vm1143, %v1132, 0
        %v1148 = vsel %vm1143, %v1116, 0
        %v1151 = vsel %vm1143, %v1117, 0
        %v1154 = vsel %vm1143, %v1118, 0
        %v1157 = vsel %vm1143, %v1119, 0
        %v1160 = vsel %vm1143, %v1120, 0
        %v1163 = vsel %vm1143, %v1121, 0
        %v1166 = vsel %vm1143, %v1122, 0
        %v1169 = vsel %vm1143, %v1123, 0
        %v1172 = vsel %vm1143, %v1124, 0
        %v1175 = vsel %vm1143, %v1125, 0
        %v1178 = vsel %vm1143, %v1126, 0
        %v1181 = vsel %vm1143, %v1127, 0
        %v1184 = vsel %vm1143, %v1128, 0
        %v1187 = vsel %vm1143, %v1129, 0
        %v1190 = vsel %vm1143, %v1130, 0
        %v1193 = vsel %vm1143, %v1131, 0
        %1195 = vmatprep.subr.mxu0 0.0
        %1196 = vmatpush1.xpose.msra.mxu0 %v1148
        %1197 = vmatprep.subr.mxu0 0.0
        %1198 = vmatpush1.xpose.msra.mxu0 %v1151
        %1199 = vmatprep.subr.mxu0 0.0
        %1200 = vmatpush1.xpose.msra.mxu0 %v1154
        %1201 = vmatprep.subr.mxu0 0.0
        %1202 = vmatpush1.xpose.msra.mxu0 %v1157
        %1203 = vmatprep.subr.mxu0 0.0
        %1204 = vmatpush1.xpose.msra.mxu0 %v1160
        %1205 = vmatprep.subr.mxu0 0.0
        %1206 = vmatpush1.xpose.msra.mxu0 %v1163
        %1207 = vmatprep.subr.mxu0 0.0
        %1208 = vmatpush1.xpose.msra.mxu0 %v1166
        %1209 = vmatprep.subr.mxu0 0.0
        %1210 = vmatpush1.xpose.msra.mxu0 %v1169
        %1211 = vmatprep.subr.mxu0 0.0
        %1212 = vmatpush1.xpose.msra.mxu0 %v1172
        %1213 = vmatprep.subr.mxu0 0.0
        %1214 = vmatpush1.xpose.msra.mxu0 %v1175
        %1215 = vmatprep.subr.mxu0 0.0
        %1216 = vmatpush1.xpose.msra.mxu0 %v1178
        %1217 = vmatprep.subr.mxu0 0.0
        %1218 = vmatpush1.xpose.msra.mxu0 %v1181
        %1219 = vmatprep.subr.mxu0 0.0
        %1220 = vmatpush1.xpose.msra.mxu0 %v1184
        %1221 = vmatprep.subr.mxu0 0.0
        %1222 = vmatpush1.xpose.msra.mxu0 %v1187
        %1223 = vmatprep.subr.mxu0 0.0
        %1224 = vmatpush1.xpose.msra.mxu0 %v1190
        %1225 = vmatprep.subr.mxu0 0.0
        %1226 = vmatpush1.xpose.msra.mxu0 %v1193
        %1227 = vmatprep.subr.mxu0 0.0
        %1228 = vmatpush1.xpose.msra.mxu0 0.0
        %1229 = vmatprep.subr.mxu0 0.0
        %1230 = vmatpush1.xpose.msra.mxu0 0.0
        %1231 = vmatprep.subr.mxu0 0.0
        %1232 = vmatpush1.xpose.msra.mxu0 0.0
        %1233 = vmatprep.subr.mxu0 0.0
        %1234 = vmatpush1.xpose.msra.mxu0 0.0
        %1235 = vmatprep.subr.mxu0 0.0
        %1236 = vmatpush1.xpose.msra.mxu0 0.0
        %1237 = vmatprep.subr.mxu0 0.0
        %1238 = vmatpush1.xpose.msra.mxu0 0.0
        %1239 = vmatprep.subr.mxu0 0.0
        %1240 = vmatpush1.xpose.msra.mxu0 0.0
        %1241 = vmatprep.subr.mxu0 0.0
        %1242 = vmatpush1.xpose.msra.mxu0 0.0
        %1243 = vmatprep.subr.mxu0 0.0
        %1244 = vmatpush1.xpose.msra.mxu0 0.0
        %1245 = vmatprep.subr.mxu0 0.0
        %1246 = vmatpush1.xpose.msra.mxu0 0.0
        %1247 = vmatprep.subr.mxu0 0.0
        %1248 = vmatpush1.xpose.msra.mxu0 0.0
        %1249 = vmatprep.subr.mxu0 0.0
        %1250 = vmatpush1.xpose.msra.mxu0 0.0
        %1251 = vmatprep.subr.mxu0 0.0
        %1252 = vmatpush1.xpose.msra.mxu0 0.0
        %1253 = vmatprep.subr.mxu0 0.0
        %1254 = vmatpush1.xpose.msra.mxu0 0.0
        %1255 = vmatprep.subr.mxu0 0.0
        %1256 = vmatpush1.xpose.msra.mxu0 0.0
        %1257 = vmatprep.subr.mxu0 0.0
        %1258 = vmatpush1.xpose.msra.mxu0 0.0
        %1259 = vmatprep.mubr.f32.mxu0 0.0
        %1260 = vmatmul.mubr.f32.gmra.mrb[0].mxu0 %v1145
        %v1261 = vpop.f32.mrb[0].mxu0
        %v1262 = vadd.f32 %v1142, %v1261
        %v1263 = vpop.f32.mrb[0].mxu0
        %1264 = vdwg.mxu0
        %1265 = vst [vmem:[%s275] sm:$0x1] %v1262
        %s1266 = sand.u32 %s183, 1
        %s1267 = scalar_lea.sflag [#allocation4], %s1266
        %s1268 = sand.u32 %s183, 1
        %s1269 = scalar_lea.vmem [#allocation3], %s1268
        // Predicated region
        $region49: #{tpu_custom_call.1} parent=47 // pred_check
          %p1270 = pneg %p193
        $region50: #{tpu_custom_call.1} parent=47 // pred_check_branch
          %1272 = sbr.rel (%p1270) target = $region52
        $region51: #{tpu_custom_call.1} parent=47 // pred_region
          %s1274 = ssub.s32 16, 16
          %1275 = vsyncadd %s1267, %s1274
          %s1276 = smul.addr %s23, 16
          %s1277 = scalar_lea.hbm %s7, %s1276
          %s1279 = sshll.u32 %s1269, 4
          %s1280 = int_to_ptr.vmem [resolvable:$true] %s1279
          %1282 = dma.vmem_to_hbm [thread:$0]  %s1280, 16, %s1277, %s1267
        $region52: #{tpu_custom_call.1} parent=47 // pred_fallthru
          _
      $region48: #{tpu_custom_call.1} parent=5 // pred_fallthru
        _
      %p1283 = scmp.le.s32.totalorder 2, %s18
      // Predicated region
      $region53: #{tpu_custom_call.1} parent=5 // pred_check
        %p1284 = pneg %p1283
      $region54: #{tpu_custom_call.1} parent=5 // pred_check_branch
        %1286 = sbr.rel (%p1284) target = $region56
      $region55: #{tpu_custom_call.1} parent=5 // pred_region
        %s1287 = ssub.s32 %s18, 2
        // Predicated region
        $region57: #{tpu_custom_call.1} parent=55 // pred_check
          %p1288 = pneg %p199
        $region58: #{tpu_custom_call.1} parent=55 // pred_check_branch
          %1290 = sbr.rel (%p1288) target = $region60
        $region59: #{tpu_custom_call.1} parent=55 // pred_region
          %s1291 = sand.u32 %s184, 1
          %s1292 = scalar_lea.sflag [#allocation4], %s1291
          %s1293 = sand.u32 %s184, 1
          %s1294 = scalar_lea.vmem [#allocation3], %s1293
          %1295 = dma.done %s1292, 16
        $region60: #{tpu_custom_call.1} parent=55 // pred_fallthru
          _
      $region56: #{tpu_custom_call.1} parent=5 // pred_fallthru
        _
    $region6: #{tpu_custom_call.1} parent=1 // loop_footer
      %s22 = sadd.s32 1, %s18
    $region7: #{tpu_custom_call.1} parent=1 // loop_footer_branch
      %17 = sbr.rel target = $region3
    $region8: #{tpu_custom_call.1} parent=1 // loop_exit
      _
    %1296 = vsyncpa [#allocation4], 1
    %s1297 = scalar_lea.sflag [#allocation4], 1
    %1298 = vsyncpa %s1297, 1

</llo_original>
